<compile_context>
chip_gen: v5e
topology: v5e:2x2
jax: 0.10.0
libtpu: 0.0.40
codegen_flags: <defaults>
</compile_context>

<pallas_src>
import functools

import jax
import jax.numpy as jnp
from jax.experimental import pallas as pl
from jax.experimental.pallas import tpu as pltpu


def _cosine_head_kernel(labels_ref, support_ref, query_ref, m_boost_ref, scale_ref,
                        out_ref, *, inv_shot, n_way):
    """One grid step == a block of TB few-shot tasks.

    labels_ref  : (TB, 1, n_support) int32
    support_ref : (TB, n_support, d) compute dtype
    query_ref   : (TB, n_query,  d)  compute dtype
    m_boost_ref : (d, d)             compute dtype  (0.5*(I+W), resident across steps)
    scale_ref   : (1,) f32 in SMEM   (ClassificationHead.scale parameter)
    out_ref     : (TB, n_way, n_query) f32          (lane-dense: n_query on lanes)
    """
    tb, n_support, d = support_ref.shape
    cdt = support_ref.dtype

    # One-hot class mask built in-kernel (VPU compares) — no materialized one-hot
    # streamed from HBM, no wrapper-side one_hot/transpose/cast passes.
    labels = labels_ref[...]                                            # (TB,1,ns) i32
    class_ids = jax.lax.broadcasted_iota(jnp.int32, (tb, n_way, n_support), 1)
    onehot = jnp.where(labels == class_ids, 1.0, 0.0).astype(cdt)       # (TB,nw,ns)

    # Class prototypes: one batched MXU matmul; balanced N-way K-shot (asserted by
    # the module) => per-class count == n_shot, folded as a compile-time constant.
    proto = jax.lax.dot_general(
        onehot, support_ref[...],
        dimension_numbers=(((2,), (1,)), ((0,), (0,))),
        preferred_element_type=jnp.float32) * inv_shot                  # (TB,nw,d) f32

    # meta_part_infer fold: boosted = proto @ M, M = 0.5*(I+W), applied to the tiny
    # prototype tensor as a well-shaped (TB*n_way, d)@(d, d) MXU matmul.
    proto2 = proto.reshape(tb * n_way, d).astype(cdt)
    proto2 = jnp.dot(proto2, m_boost_ref[...],
                     preferred_element_type=jnp.float32)                # (TB*nw,d) f32

    eps2 = jnp.float32(1e-16)   # (1e-8)^2 -> matches F.cosine_similarity eps
    # rsqrt goes to the EUP (otherwise-idle slot); normalize prototypes before the
    # cosine dot so no post-dot broadcast over the n_way axis is needed.
    inv_p = jax.lax.rsqrt(
        jnp.maximum(jnp.sum(proto2 * proto2, axis=-1, keepdims=True), eps2))
    proto_n = (proto2 * inv_p).astype(cdt).reshape(tb, n_way, d)        # (TB,nw,d)

    # Query inverse norms: f32 accumulation only in the reduction; the matmul
    # operands stay in compute_dtype.  scale is folded in here so the final write
    # is a single VPU multiply.  Layout (TB, 1, n_query) broadcasts over the n_way
    # sublane axis without a transpose.
    q = query_ref[...]                                                  # (TB,nq,d)
    qf = q.astype(jnp.float32)
    inv_q = jax.lax.rsqrt(jnp.maximum(jnp.sum(qf * qf, axis=-1), eps2))  # (TB,nq)
    inv_q = (inv_q * scale_ref[0])[:, None, :]                           # (TB,1,nq)

    # Cosine logits with n_query on the lane axis (lane-dense stores; n_way ~5 would
    # force masked vst.msk and heavily padded output tiles).
    dots = jax.lax.dot_general(
        proto_n, q,
        dimension_numbers=(((2,), (2,)), ((0,), (0,))),
        preferred_element_type=jnp.float32)                             # (TB,nw,nq)
    out_ref[...] = dots * inv_q


def _round_up(x, m):
    return ((x + m - 1) // m) * m


def _choose_task_block(n_tasks, n_support, n_query, d, n_way, itemsize):
    """Pick tasks-per-grid-step (TB) and a matching scoped-VMEM limit.

    Accounts for (8,128)/(16,128) tile padding of every VMEM block and for the
    in-kernel f32 temporaries; derives the budget from the chip's actual VMEM
    (64 MiB on v7x, 128 MiB on v5e/v6e).  Prefers a TB that divides n_tasks (no
    wrapper-side jnp.pad pass) and, when it costs < 2x in block size, an even
    number of grid steps so both v7x TensorCores stay busy.
    """
    sub = 8 if itemsize >= 4 else (16 if itemsize == 2 else 32)
    lanes_d = _round_up(d, 128)
    lanes_ns = _round_up(n_support, 128)
    lanes_nq = _round_up(n_query, 128)

    # padded per-task bytes of the pipelined blocks (each double-buffered)
    blk = (8 * lanes_ns * 4                                    # labels (1, ns) int32
           + _round_up(n_support, sub) * lanes_d * itemsize    # support
           + _round_up(n_query, sub) * lanes_d * itemsize      # query
           + _round_up(n_way, 8) * lanes_nq * 4)               # output (nw, nq) f32
    # padded per-task bytes of in-kernel temporaries (roughly all live at peak)
    tmp = (_round_up(n_way, sub) * lanes_ns * itemsize         # one-hot mask
           + 3 * _round_up(n_way, 8) * lanes_d * 4             # proto / boosted / norm'd
           + _round_up(n_query, 8) * lanes_d * 4               # f32 copy for query norms
           + _round_up(n_way, 8) * lanes_nq * 4)               # dots

    try:
        vmem_capacity = int(pltpu.get_tpu_info().vmem_capacity_bytes)
    except Exception:  # conservative fallback: v7x has 64 MiB per TensorCore
        vmem_capacity = 64 * 1024 * 1024

    fixed = 2 * _round_up(d, sub) * lanes_d * itemsize         # resident m_boost tile
    budget = max(int(vmem_capacity * 0.5) - fixed, blk)
    tb_max = max(1, budget // (2 * blk + tmp))
    tb_max = int(min(tb_max, n_tasks, 1024))

    divisors = [t for t in range(1, tb_max + 1) if n_tasks % t == 0]
    best_div = max(divisors) if divisors else 1
    even_div = [t for t in divisors if (n_tasks // t) % 2 == 0]
    if divisors and 4 * best_div >= tb_max:
        tb = best_div
        if even_div and 2 * max(even_div) >= best_div:
            tb = max(even_div)          # balanced even block count (v7x megacore)
    else:
        tb = tb_max                     # ragged tail handled by a padded last block

    vmem_limit = int(min(vmem_capacity * 0.75, 128 * 1024 * 1024))
    return int(tb), vmem_limit


@functools.partial(jax.jit, static_argnames=("n_way", "n_shot", "compute_dtype"))
def classification_head_forward(scale, w_boost, k_all, query, support,
                                support_labels, n_way, n_shot,
                                compute_dtype=jnp.bfloat16):
    """Equivalent of ClassificationHead(base_learner='CosineNetHead').forward(...).

    compute_dtype: storage dtype streamed through the kernel (bf16 by default —
    halves the dominant support/query HBM traffic on all generations); all matmul
    accumulation and norm/elementwise math stays f32.  The casts below are no-ops
    when the embeddings already arrive in compute_dtype.
    """
    del k_all  # consumed by the (synthetic) meta_part_infer, which ignores it
    T, n_query, d = query.shape
    n_support = support.shape[1]
    assert n_support == n_way * n_shot
    # NOTE: like the reference, per-class balance (exactly n_shot examples of every
    # class per task) is assumed; the kernel divides by the constant 1/n_shot.

    # meta_part_infer stand-in (linear): proto*0.5 + (proto @ W)*0.5 == proto @ M
    # with M = 0.5*(I + W); applied in-kernel to the tiny prototype tensor.
    m_boost = (0.5 * (jnp.eye(d, dtype=jnp.float32) + w_boost.astype(jnp.float32))
               ).astype(compute_dtype)

    support_c = support.astype(compute_dtype)
    query_c = query.astype(compute_dtype)
    labels = support_labels.astype(jnp.int32).reshape(T, 1, n_support)
    scale_arr = jnp.reshape(scale, (1,)).astype(jnp.float32)

    itemsize = jnp.dtype(compute_dtype).itemsize
    tb, vmem_limit = _choose_task_block(T, n_support, n_query, d, n_way, itemsize)
    num_blocks = -(-T // tb)
    t_pad = num_blocks * tb
    if t_pad != T:  # only when no good divisor of T exists near the VMEM budget
        pad = [(0, t_pad - T), (0, 0), (0, 0)]
        labels = jnp.pad(labels, pad)
        support_c = jnp.pad(support_c, pad)
        query_c = jnp.pad(query_c, pad)

    kernel = functools.partial(_cosine_head_kernel,
                               inv_shot=1.0 / n_shot, n_way=n_way)

    out = pl.pallas_call(
        kernel,
        out_shape=jax.ShapeDtypeStruct((t_pad, n_way, n_query), jnp.float32),
        grid_spec=pltpu.PrefetchScalarGridSpec(
            num_scalar_prefetch=0,
            grid=(num_blocks,),
            in_specs=[
                pl.BlockSpec((tb, 1, n_support), lambda t: (t, 0, 0)),
                pl.BlockSpec((tb, n_support, d), lambda t: (t, 0, 0)),
                pl.BlockSpec((tb, n_query, d), lambda t: (t, 0, 0)),
                pl.BlockSpec((d, d), lambda t: (0, 0)),   # fetched once, resident
                pl.BlockSpec(memory_space=pltpu.MemorySpace.SMEM),
            ],
            out_specs=pl.BlockSpec((tb, n_way, n_query), lambda t: (t, 0, 0)),
        ),
        compiler_params=pltpu.CompilerParams(
            dimension_semantics=("parallel",),
            vmem_limit_bytes=vmem_limit,
        ),
    )(labels, support_c, query_c, m_boost, scale_arr)

    # Kernel emits lane-dense (T, n_way, n_query); present the module's
    # (T, n_query, n_way) layout with one cheap transpose of the small logits.
    return jnp.swapaxes(out[:T], 1, 2)


def _reference_forward(scale, w_boost, query, support, support_labels, n_way):
    """Pure-JAX reference of ClassificationHead + CosineNetHead (for verification)."""
    hp = jax.lax.Precision.HIGHEST
    onehot = jax.nn.one_hot(support_labels, n_way, dtype=jnp.float32)        # (T,ns,w)
    lt = jnp.swapaxes(onehot, 1, 2)                                          # (T,w,ns)
    proto = jnp.einsum("tws,tsd->twd", lt, support, precision=hp)
    proto = proto / jnp.sum(lt, axis=2, keepdims=True)
    boost = jnp.einsum("twd,de->twe", proto, w_boost, precision=hp)
    proto = proto * 0.5 + boost * 0.5
    eps = 1e-8
    qn = jnp.maximum(jnp.linalg.norm(query, axis=-1, keepdims=True), eps)
    pn = jnp.maximum(jnp.linalg.norm(proto, axis=-1, keepdims=True), eps)
    cos = jnp.einsum("tqd,twd->tqw", query / qn, proto / pn, precision=hp)
    return scale * cos


if __name__ == "__main__":
    # small deterministic problem: 2 tasks, 4-way 1-shot, 8 queries, d=32
    T, n_way, n_shot, n_query, d = 2, 4, 1, 8, 32
    n_support = n_way * n_shot

    key = jax.random.PRNGKey(0)
    k_q, k_s, k_w, k_kall = jax.random.split(key, 4)

    query = jax.random.normal(k_q, (T, n_query, d), dtype=jnp.float32)
    support = jax.random.normal(k_s, (T, n_support, d), dtype=jnp.float32)
    # one support example per class (1-shot): labels 0..n_way-1 per task
    support_labels = jnp.tile(jnp.arange(n_way, dtype=jnp.int32)[None, :], (T, 1))
    k_all = jax.random.randint(k_kall, (T, n_way), 0, 64, dtype=jnp.int32)

    # ClassificationHead parameter: scale, initialized to 1.0 (as nn.Parameter([1.0]))
    scale = jnp.array([1.0], dtype=jnp.float32)
    # synthetic meta_part_infer weights (deterministic)
    w_boost = (jax.random.normal(k_w, (d, d), dtype=jnp.float32) * 0.05
               + jnp.eye(d, dtype=jnp.float32))

    ref = _reference_forward(scale, w_boost, query, support, support_labels, n_way)

    # strict check on the f32 storage path
    out = classification_head_forward(scale, w_boost, k_all, query, support,
                                      support_labels, n_way, n_shot,
                                      compute_dtype=jnp.float32)
    out = jax.block_until_ready(out)
    assert out.shape == (T, n_query, n_way)
    assert jnp.allclose(out, ref, atol=1e-3, rtol=1e-3), \
        float(jnp.max(jnp.abs(out - ref)))

    # default bf16 storage path (halves HBM traffic); accumulation stays f32
    out_bf16 = classification_head_forward(scale, w_boost, k_all, query, support,
                                           support_labels, n_way, n_shot)
    out_bf16 = jax.block_until_ready(out_bf16)
    assert out_bf16.shape == (T, n_query, n_way)
    assert jnp.allclose(out_bf16, ref, atol=5e-2, rtol=5e-2), \
        float(jnp.max(jnp.abs(out_bf16 - ref)))

    print("KERNEL_OK")
</pallas_src>

<mosaic_0001>
module attributes {stable_mosaic.version = 11 : i64} {
  func.func @_cosine_head_kernel(%arg0: i32, %arg1: memref<1x1x4xi32, #tpu.memory_space<vmem>>, %arg2: memref<1x4x32xf32, #tpu.memory_space<vmem>>, %arg3: memref<1x8x32xf32, #tpu.memory_space<vmem>>, %arg4: memref<32x32xf32, #tpu.memory_space<vmem>>, %arg5: memref<1xf32, #tpu.memory_space<smem>>, %arg6: memref<1x4x8xf32, #tpu.memory_space<vmem>>) attributes {dimension_semantics = [#tpu.dimension_semantics<parallel>], iteration_bounds = array<i64: 2>, scalar_prefetch = 0 : i64, scratch_operands = 0 : i64, tpu.core_type = #tpu.core_type<tc>, window_params = [{transform_indices = @transform_0, window_bounds = array<i64: 1, 1, 4>}, {transform_indices = @transform_1, window_bounds = array<i64: 1, 4, 32>}, {transform_indices = @transform_2, window_bounds = array<i64: 1, 8, 32>}, {pipeline_mode = #tpu.pipeline_mode<synchronous>, transform_indices = @transform_3, window_bounds = array<i64: 32, 32>}, {transform_indices = @transform_4, window_bounds = array<i64: 1>}, {transform_indices = @transform_5, window_bounds = array<i64: 1, 4, 8>}]} {
    %c0 = arith.constant 0 : index
    %c0_0 = arith.constant 0 : index
    %c0_1 = arith.constant 0 : index
    %0 = vector.load %arg1[%c0, %c0_0, %c0_1] : memref<1x1x4xi32, #tpu.memory_space<vmem>>, vector<1x1x4xi32>
    %1 = tpu.iota {dimensions = array<i32: 1>} : vector<1x4x4xi32>
    %2 = vector.broadcast %0 : vector<1x1x4xi32> to vector<1x4x4xi32>
    %3 = arith.cmpi eq, %2, %1 : vector<1x4x4xi32>
    %cst = arith.constant 1.000000e+00 : f32
    %cst_2 = arith.constant 0.000000e+00 : f32
    %4 = vector.broadcast %cst : f32 to vector<1x4x4xf32>
    %5 = vector.broadcast %cst_2 : f32 to vector<1x4x4xf32>
    %6 = arith.select %3, %4, %5 : vector<1x4x4xi1>, vector<1x4x4xf32>
    %c0_3 = arith.constant 0 : index
    %c0_4 = arith.constant 0 : index
    %c0_5 = arith.constant 0 : index
    %7 = vector.load %arg2[%c0_3, %c0_4, %c0_5] : memref<1x4x32xf32, #tpu.memory_space<vmem>>, vector<1x4x32xf32>
    %cst_6 = arith.constant dense<0.000000e+00> : vector<1x4x32xf32>
    %8 = tpu.matmul %6, %7, %cst_6 {dimension_numbers = #tpu.dot_dimension_numbers<[2], [1], [1], [2], [0, 0, 0, 1, 1, 2], [0], [0]>} : vector<1x4x4xf32>, vector<1x4x32xf32>, vector<1x4x32xf32> -> vector<1x4x32xf32>
    %cst_7 = arith.constant 1.000000e+00 : f32
    %9 = vector.broadcast %cst_7 : f32 to vector<1x4x32xf32>
    %10 = arith.mulf %8, %9 : vector<1x4x32xf32>
    %11 = vector.shape_cast %10 : vector<1x4x32xf32> to vector<4x32xf32>
    %c0_8 = arith.constant 0 : index
    %c0_9 = arith.constant 0 : index
    %12 = vector.load %arg4[%c0_8, %c0_9] : memref<32x32xf32, #tpu.memory_space<vmem>>, vector<32x32xf32>
    %cst_10 = arith.constant dense<0.000000e+00> : vector<4x32xf32>
    %13 = tpu.matmul %11, %12, %cst_10 {dimension_numbers = #tpu.dot_dimension_numbers<[1], [0], [0], [1], [0, 0, 1, 1], [], []>} : vector<4x32xf32>, vector<32x32xf32>, vector<4x32xf32> -> vector<4x32xf32>
    %14 = arith.mulf %13, %13 : vector<4x32xf32>
    %cst_11 = arith.constant dense<0.000000e+00> : vector<4xf32>
    %15 = vector.multi_reduction <add>, %14, %cst_11 [1] : vector<4x32xf32> to vector<4xf32>
    %16 = vector.shape_cast %15 : vector<4xf32> to vector<4x1xf32>
    %cst_12 = arith.constant 1.000000e-16 : f32
    %17 = vector.broadcast %cst_12 : f32 to vector<4x1xf32>
    %18 = arith.maximumf %16, %17 : vector<4x1xf32>
    %19 = math.rsqrt %18 : vector<4x1xf32>
    %20 = vector.broadcast %19 : vector<4x1xf32> to vector<4x32xf32>
    %21 = arith.mulf %13, %20 : vector<4x32xf32>
    %22 = vector.shape_cast %21 : vector<4x32xf32> to vector<1x4x32xf32>
    %c0_13 = arith.constant 0 : index
    %c0_14 = arith.constant 0 : index
    %c0_15 = arith.constant 0 : index
    %23 = vector.load %arg3[%c0_13, %c0_14, %c0_15] : memref<1x8x32xf32, #tpu.memory_space<vmem>>, vector<1x8x32xf32>
    %24 = arith.mulf %23, %23 : vector<1x8x32xf32>
    %cst_16 = arith.constant dense<0.000000e+00> : vector<1x8xf32>
    %25 = vector.multi_reduction <add>, %24, %cst_16 [2] : vector<1x8x32xf32> to vector<1x8xf32>
    %cst_17 = arith.constant 1.000000e-16 : f32
    %26 = vector.broadcast %cst_17 : f32 to vector<1x8xf32>
    %27 = arith.maximumf %25, %26 : vector<1x8xf32>
    %28 = math.rsqrt %27 : vector<1x8xf32>
    %c0_18 = arith.constant 0 : index
    %29 = memref.load %arg5[%c0_18] : memref<1xf32, #tpu.memory_space<smem>>
    %30 = vector.broadcast %29 : f32 to vector<1x8xf32>
    %31 = arith.mulf %28, %30 : vector<1x8xf32>
    %32 = vector.shape_cast %31 : vector<1x8xf32> to vector<1x1x8xf32>
    %cst_19 = arith.constant dense<0.000000e+00> : vector<1x4x8xf32>
    %33 = tpu.matmul %22, %23, %cst_19 {dimension_numbers = #tpu.dot_dimension_numbers<[2], [2], [1], [1], [0, 0, 0, 1, 1, 1], [0], [0]>} : vector<1x4x32xf32>, vector<1x8x32xf32>, vector<1x4x8xf32> -> vector<1x4x8xf32>
    %34 = vector.broadcast %32 : vector<1x1x8xf32> to vector<1x4x8xf32>
    %35 = arith.mulf %33, %34 : vector<1x4x8xf32>
    %c0_20 = arith.constant 0 : index
    %c0_21 = arith.constant 0 : index
    %c0_22 = arith.constant 0 : index
    %36 = vector.load %arg6[%c0_20, %c0_21, %c0_22] : memref<1x4x8xf32, #tpu.memory_space<vmem>>, vector<1x4x8xf32>
    tpu.vector_store %arg6[%c0_20, %c0_21, %c0_22], %35 {strides = array<i32>} : memref<1x4x8xf32, #tpu.memory_space<vmem>>, vector<1x4x8xf32>,
    return
  }
  func.func @transform_0(%arg0: i32) -> (i32, i32, i32) {
    %c0_i32 = arith.constant 0 : i32
    %c0_i32_0 = arith.constant 0 : i32
    %c0_i32_1 = arith.constant 0 : i32
    return %arg0, %c0_i32, %c0_i32_0 : i32, i32, i32
  }
  func.func @transform_1(%arg0: i32) -> (i32, i32, i32) {
    %c0_i32 = arith.constant 0 : i32
    %c0_i32_0 = arith.constant 0 : i32
    %c0_i32_1 = arith.constant 0 : i32
    return %arg0, %c0_i32, %c0_i32_0 : i32, i32, i32
  }
  func.func @transform_2(%arg0: i32) -> (i32, i32, i32) {
    %c0_i32 = arith.constant 0 : i32
    %c0_i32_0 = arith.constant 0 : i32
    %c0_i32_1 = arith.constant 0 : i32
    return %arg0, %c0_i32, %c0_i32_0 : i32, i32, i32
  }
  func.func @transform_3(%arg0: i32) -> (i32, i32) {
    %c0_i32 = arith.constant 0 : i32
    %c0_i32_0 = arith.constant 0 : i32
    %c0_i32_1 = arith.constant 0 : i32
    return %c0_i32, %c0_i32_0 : i32, i32
  }
  func.func @transform_4(%arg0: i32) -> i32 {
    %c0_i32 = arith.constant 0 : i32
    %c0_i32_0 = arith.constant 0 : i32
    return %c0_i32 : i32
  }
  func.func @transform_5(%arg0: i32) -> (i32, i32, i32) {
    %c0_i32 = arith.constant 0 : i32
    %c0_i32_0 = arith.constant 0 : i32
    %c0_i32_1 = arith.constant 0 : i32
    return %arg0, %c0_i32, %c0_i32_0 : i32, i32, i32
  }
}

</mosaic_0001>

<llo_original>
// kernel: classification_head_forward.1
$region0: #{classification_head_forward.1}
  #allocation0 [shape = 'u32[]', space=smem, size = 0x4, offset = 0x4, fixed_abs, tag = 'smem constant byte address 0x4 - core index']
  #allocation1 [shape = 'u32[72,128]{1,0:T(1,128)}', space=vmem, size = 0x9000, scoped, tag = 'internal scratch']
  #allocation2 [shape = 'f32[1]{0:T(128)S(6)}', space=smem, size = 0x200, scoped, tag = 'scoped memory for classification_head_forward.1']
  %s0 = inlined_call_operand.vmem [shape: s32[2,1,4], index: 0, kind: input, shape index: {}]
  %s1 = inlined_call_operand.vmem [shape: f32[2,4,32], index: 1, kind: input, shape index: {}]
  %s2 = inlined_call_operand.vmem [shape: f32[2,8,32], index: 2, kind: input, shape index: {}]
  %s3 = inlined_call_operand.vmem [shape: f32[32,32], index: 3, kind: input, shape index: {}]
  %s4 = inlined_call_operand.<no memory space> [shape: f32[1], index: 4, kind: input, shape index: {}]
  %s5 = inlined_call_operand.hbm [shape: f32[2,4,8], index: 5, kind: output, shape index: {}]
  %s6 = sld [smem:[#allocation0]]
  $region53: #{classification_head_forward.1} parent=0
    _
  %s8 = ssub.s32 1, %s6
  %s9 = scalar_select 0, %s8, %s6
  %10 = sst [smem:[#allocation2]] %s4
  $region1: #{classification_head_forward.1} parent=0
    #allocation3 [shape = 'u8[4096]{0}', space=vmem, size = 0x1000, scoped, tag = 'output window, operand 0']
    #allocation4 [shape = 's32[2]{0}', space=sflag, size = 0x8, scoped, tag = 'scoped memory for classification_head_forward.1']
    %11 = vsyncpa [#allocation4], 0
    %s12 = scalar_lea.sflag [#allocation4], 1
    %13 = vsyncpa %s12, 0
    loop: start=0, step=1, limit=4
    $region2: #{classification_head_forward.1} parent=1 // loop_pre_header
      _
    $region3: #{classification_head_forward.1} parent=1 // loop_header
      %s15 = sphi 0, %s19
      %p16 = scmp.ge.s32.totalorder %s15, 4
      %s25 = sphi 0, %s27
      %s28 = sphi 0, %s25
      %s29 = sphi 0, %s28
      %s45 = sphi 0, %s29
      %s51 = sphi 0, %s53
      %s54 = sphi 0, %s51
      %s55 = sphi 0, %s54
      %s71 = sphi 0, %s55
      %s77 = sphi 0, %s79
      %s80 = sphi 0, %s77
      %s81 = sphi 0, %s80
      %s97 = sphi 0, %s81
      %s101 = sphi 0, %s101
      %s103 = sphi 0, %s101
      %s104 = sphi 0, %s103
      %s118 = sphi 0, %s104
      %s122 = sphi 0, %s122
      %s124 = sphi 0, %s122
      %s125 = sphi 0, %s124
      %s139 = sphi 0, %s125
      %s145 = sphi 0, %s147
      %s148 = sphi 0, %s145
      %s149 = sphi 0, %s148
      %s165 = sphi 0, %s149
    $region4: #{classification_head_forward.1} parent=1 // loop_header_branch
      %18 = sbr.rel (%p16) target = $region8
    $region5: #{classification_head_forward.1} parent=1 // loop_body
      %s20 = ssub.s32 %s15, 1
      %s21 = ssub.s32 %s15, 2
      %s22 = sadd.s32 %s15, 1
      %s23 = ssub.s32 %s15, %s22
      %p24 = scmp.eq.s32.totalorder %s23, 0
      %s26 = sadd.s32 %s25, 1
      %s27 = scalar_select %p24, %s25, %s26
      %p30 = pneg %p24
      %p31 = scmp.eq.s32.totalorder %s15, 1
      %p32 = por %p30, %p31
      %p33 = scmp.ne.s32.totalorder %s25, %s28
      %p34 = scmp.eq.s32.totalorder %s15, 0
      %p35 = por %p33, %p34
      %p36 = scmp.ne.s32.totalorder %s25, %s28
      %p37 = scmp.eq.s32.totalorder %s20, 1
      %p38 = por %p36, %p37
      %p39 = scmp.ne.s32.totalorder %s28, %s29
      %p40 = scmp.eq.s32.totalorder %s20, 0
      %p41 = por %p39, %p40
      %p42 = scmp.ne.s32.totalorder %s28, %s29
      %p43 = scmp.eq.s32.totalorder %s21, 1
      %p44 = por %p42, %p43
      %p46 = scmp.ne.s32.totalorder %s29, %s45
      %p47 = scmp.eq.s32.totalorder %s21, 0
      %p48 = por %p46, %p47
      %s49 = ssub.s32 %s15, %s22
      %p50 = scmp.eq.s32.totalorder %s49, 0
      %s52 = sadd.s32 %s51, 1
      %s53 = scalar_select %p50, %s51, %s52
      %p56 = pneg %p50
      %p57 = scmp.eq.s32.totalorder %s15, 1
      %p58 = por %p56, %p57
      %p59 = scmp.ne.s32.totalorder %s51, %s54
      %p60 = scmp.eq.s32.totalorder %s15, 0
      %p61 = por %p59, %p60
      %p62 = scmp.ne.s32.totalorder %s51, %s54
      %p63 = scmp.eq.s32.totalorder %s20, 1
      %p64 = por %p62, %p63
      %p65 = scmp.ne.s32.totalorder %s54, %s55
      %p66 = scmp.eq.s32.totalorder %s20, 0
      %p67 = por %p65, %p66
      %p68 = scmp.ne.s32.totalorder %s54, %s55
      %p69 = scmp.eq.s32.totalorder %s21, 1
      %p70 = por %p68, %p69
      %p72 = scmp.ne.s32.totalorder %s55, %s71
      %p73 = scmp.eq.s32.totalorder %s21, 0
      %p74 = por %p72, %p73
      %s75 = ssub.s32 %s15, %s22
      %p76 = scmp.eq.s32.totalorder %s75, 0
      %s78 = sadd.s32 %s77, 1
      %s79 = scalar_select %p76, %s77, %s78
      %p82 = pneg %p76
      %p83 = scmp.eq.s32.totalorder %s15, 1
      %p84 = por %p82, %p83
      %p85 = scmp.ne.s32.totalorder %s77, %s80
      %p86 = scmp.eq.s32.totalorder %s15, 0
      %p87 = por %p85, %p86
      %p88 = scmp.ne.s32.totalorder %s77, %s80
      %p89 = scmp.eq.s32.totalorder %s20, 1
      %p90 = por %p88, %p89
      %p91 = scmp.ne.s32.totalorder %s80, %s81
      %p92 = scmp.eq.s32.totalorder %s20, 0
      %p93 = por %p91, %p92
      %p94 = scmp.ne.s32.totalorder %s80, %s81
      %p95 = scmp.eq.s32.totalorder %s21, 1
      %p96 = por %p94, %p95
      %p98 = scmp.ne.s32.totalorder %s81, %s97
      %p99 = scmp.eq.s32.totalorder %s21, 0
      %p100 = por %p98, %p99
      %s102 = sadd.s32 %s101, 1
      %p105 = scmp.eq.s32.totalorder %s15, 1
      %p106 = scmp.ne.s32.totalorder %s101, %s103
      %p107 = scmp.eq.s32.totalorder %s15, 0
      %p108 = por %p106, %p107
      %p109 = scmp.ne.s32.totalorder %s101, %s103
      %p110 = scmp.eq.s32.totalorder %s20, 1
      %p111 = por %p109, %p110
      %p112 = scmp.ne.s32.totalorder %s103, %s104
      %p113 = scmp.eq.s32.totalorder %s20, 0
      %p114 = por %p112, %p113
      %p115 = scmp.ne.s32.totalorder %s103, %s104
      %p116 = scmp.eq.s32.totalorder %s21, 1
      %p117 = por %p115, %p116
      %p119 = scmp.ne.s32.totalorder %s104, %s118
      %p120 = scmp.eq.s32.totalorder %s21, 0
      %p121 = por %p119, %p120
      %s123 = sadd.s32 %s122, 1
      %p126 = scmp.eq.s32.totalorder %s15, 1
      %p127 = scmp.ne.s32.totalorder %s122, %s124
      %p128 = scmp.eq.s32.totalorder %s15, 0
      %p129 = por %p127, %p128
      %p130 = scmp.ne.s32.totalorder %s122, %s124
      %p131 = scmp.eq.s32.totalorder %s20, 1
      %p132 = por %p130, %p131
      %p133 = scmp.ne.s32.totalorder %s124, %s125
      %p134 = scmp.eq.s32.totalorder %s20, 0
      %p135 = por %p133, %p134
      %p136 = scmp.ne.s32.totalorder %s124, %s125
      %p137 = scmp.eq.s32.totalorder %s21, 1
      %p138 = por %p136, %p137
      %p140 = scmp.ne.s32.totalorder %s125, %s139
      %p141 = scmp.eq.s32.totalorder %s21, 0
      %p142 = por %p140, %p141
      %s143 = ssub.s32 %s15, %s22
      %p144 = scmp.eq.s32.totalorder %s143, 0
      %s146 = sadd.s32 %s145, 1
      %s147 = scalar_select %p144, %s145, %s146
      %p150 = pneg %p144
      %p151 = scmp.eq.s32.totalorder %s15, 1
      %p152 = por %p150, %p151
      %p153 = scmp.ne.s32.totalorder %s145, %s148
      %p154 = scmp.eq.s32.totalorder %s15, 0
      %p155 = por %p153, %p154
      %p156 = scmp.ne.s32.totalorder %s145, %s148
      %p157 = scmp.eq.s32.totalorder %s20, 1
      %p158 = por %p156, %p157
      %p159 = scmp.ne.s32.totalorder %s148, %s149
      %p160 = scmp.eq.s32.totalorder %s20, 0
      %p161 = por %p159, %p160
      %p162 = scmp.ne.s32.totalorder %s148, %s149
      %p163 = scmp.eq.s32.totalorder %s21, 1
      %p164 = por %p162, %p163
      %p166 = scmp.ne.s32.totalorder %s149, %s165
      %p167 = scmp.eq.s32.totalorder %s21, 0
      %p168 = por %p166, %p167
      %p169 = scmp.le.s32.totalorder 1, %s15
      %p170 = scmp.lt.s32.totalorder %s15, 3
      %p171 = pnand %p169, %p170
      %p172 = pneg %p171
      // Predicated region
      $region9: #{classification_head_forward.1} parent=5 // pred_check
        _
      $region10: #{classification_head_forward.1} parent=5 // pred_check_branch
        %174 = sbr.rel (%p171) target = $region12
      $region11: #{classification_head_forward.1} parent=5 // pred_region
        %s175 = ssub.s32 %s15, 1
        // Predicated region
        $region13: #{classification_head_forward.1} parent=11 // pred_check
          %p176 = pneg %p114
        $region14: #{classification_head_forward.1} parent=11 // pred_check_branch
          %178 = sbr.rel (%p176) target = $region16
        $region15: #{classification_head_forward.1} parent=11 // pred_region
          _
        $region16: #{classification_head_forward.1} parent=11 // pred_fallthru
          _
        // Predicated region
        $region17: #{classification_head_forward.1} parent=11 // pred_check
          %p179 = pneg %p135
        $region18: #{classification_head_forward.1} parent=11 // pred_check_branch
          %181 = sbr.rel (%p179) target = $region20
        $region19: #{classification_head_forward.1} parent=11 // pred_region
          _
        $region20: #{classification_head_forward.1} parent=11 // pred_fallthru
          _
      $region12: #{classification_head_forward.1} parent=5 // pred_fallthru
        _
      %p182 = scmp.lt.s32.totalorder %s15, 2
      // Predicated region
      $region21: #{classification_head_forward.1} parent=5 // pred_check
        %p183 = pneg %p182
      $region22: #{classification_head_forward.1} parent=5 // pred_check_branch
        %185 = sbr.rel (%p183) target = $region24
      $region23: #{classification_head_forward.1} parent=5 // pred_region
        // Predicated region
        $region25: #{classification_head_forward.1} parent=23 // pred_check
          %p186 = pneg %p35
        $region26: #{classification_head_forward.1} parent=23 // pred_check_branch
          %188 = sbr.rel (%p186) target = $region28
        $region27: #{classification_head_forward.1} parent=23 // pred_region
          %p189 = scmp.lt.s32.totalorder %s15, 1
          %s190 = scalar_select %p189, %s15, 1
          %s191 = scalar_lea.vmem %s0, %s190
        $region28: #{classification_head_forward.1} parent=23 // pred_fallthru
          _
        // Predicated region
        $region29: #{classification_head_forward.1} parent=23 // pred_check
          %p192 = pneg %p61
        $region30: #{classification_head_forward.1} parent=23 // pred_check_branch
          %194 = sbr.rel (%p192) target = $region32
        $region31: #{classification_head_forward.1} parent=23 // pred_region
          %p195 = scmp.lt.s32.totalorder %s15, 1
          %s196 = scalar_select %p195, %s15, 1
          %s197 = smul.addr %s196, 4
          %s198 = scalar_lea.vmem %s1, %s197
        $region32: #{classification_head_forward.1} parent=23 // pred_fallthru
          _
        // Predicated region
        $region33: #{classification_head_forward.1} parent=23 // pred_check
          %p199 = pneg %p87
        $region34: #{classification_head_forward.1} parent=23 // pred_check_branch
          %201 = sbr.rel (%p199) target = $region36
        $region35: #{classification_head_forward.1} parent=23 // pred_region
          %p202 = scmp.lt.s32.totalorder %s15, 1
          %s203 = scalar_select %p202, %s15, 1
          %s204 = smul.addr %s203, 8
          %s205 = scalar_lea.vmem %s2, %s204
        $region36: #{classification_head_forward.1} parent=23 // pred_fallthru
          _
      $region24: #{classification_head_forward.1} parent=5 // pred_fallthru
        _
      %p206 = scmp.le.s32.totalorder 1, %s15
      %p207 = scmp.lt.s32.totalorder %s15, 3
      %p208 = pnand %p206, %p207
      %p209 = pneg %p208
      // Predicated region
      $region37: #{classification_head_forward.1} parent=5 // pred_check
        _
      $region38: #{classification_head_forward.1} parent=5 // pred_check_branch
        %211 = sbr.rel (%p208) target = $region40
      $region39: #{classification_head_forward.1} parent=5 // pred_region
        %s212 = ssub.s32 %s15, 1
        %p213 = scmp.lt.s32.totalorder %s20, 1
        %s214 = scalar_select %p213, %s20, 1
        %s215 = scalar_lea.vmem %s0, %s214
        %p216 = pneg %p41
        %p217 = pneg %p38
        %p218 = scmp.lt.s32.totalorder %s20, 1
        %s219 = scalar_select %p218, %s20, 1
        %s220 = smul.addr %s219, 4
        %s221 = scalar_lea.vmem %s1, %s220
        %p222 = pneg %p67
        %p223 = pneg %p64
        %p224 = scmp.lt.s32.totalorder %s20, 1
        %s225 = scalar_select %p224, %s20, 1
        %s226 = smul.addr %s225, 8
        %s227 = scalar_lea.vmem %s2, %s226
        %p228 = pneg %p93
        %p229 = pneg %p90
        %p230 = pneg %p114
        %p231 = pneg %p111
        %p232 = pneg %p135
        %p233 = pneg %p132
        %p234 = pneg %p161
        %p235 = pneg %p158
        %s236 = sand.u32 %s148, 1
        %s237 = scalar_lea.sflag [#allocation4], %s236
        %s238 = sand.u32 %s148, 1
        %s239 = smul.addr %s238, 4
        %s240 = scalar_lea.vmem [#allocation3], %s239
        %p241 = scmp.lt.s32.totalorder %s20, 1
        %s242 = scalar_select %p241, %s20, 1
        %s243 = scalar_lea.vmem %s0, %s242
        %p244 = scmp.lt.s32.totalorder %s20, 1
        %s245 = scalar_select %p244, %s20, 1
        %s246 = smul.addr %s245, 4
        %s247 = scalar_lea.vmem %s1, %s246
        %p248 = scmp.lt.s32.totalorder %s20, 1
        %s249 = scalar_select %p248, %s20, 1
        %s250 = smul.addr %s249, 8
        %s251 = scalar_lea.vmem %s2, %s250
        %v252 = vld [vmem:[%s243] sm:$0x1]
        %v253 = vlaneseq
        %v254 = vshrl.u32 %v253, 7
        %v255 = vperm.slane %v252, 0
        %vm256 = vcmp.eq.s32.totalorder %v255, %v254
        %v257 = vsel %vm256, 1.0, 0.0
        %v258 = vld [vmem:[%s247] sm:$0xf]
        %vm259 = vcmask 31744
        %v261 = vsel %vm259, %v257, 0
        %vm263 = vcmask 1043456
        %v265 = vsel %vm263, %v258, 0
        %267 = vmatpush.msra.mxu0 0.0
        %268 = vmatpush.msra.mxu0 0.0
        %269 = vmatpush.msra.mxu0 0.0
        %270 = vmatpush.msra.mxu0 0.0
        %271 = vmatpush.msra.mxu0 0.0
        %272 = vmatpush.msra.mxu0 0.0
        %273 = vmatpush.msra.mxu0 0.0
        %274 = vmatpush.msra.mxu0 0.0
        %275 = vmatpush.msra.mxu0 0.0
        %276 = vmatpush.msra.mxu0 0.0
        %277 = vmatpush.msra.mxu0 0.0
        %278 = vmatpush.msra.mxu0 0.0
        %279 = vmatpush.msra.mxu0 0.0
        %280 = vmatpush.msra.mxu0 0.0
        %281 = vmatpush.msra.mxu0 0.0
        %282 = vmatpush.msra.mxu0 %v265
        %283 = vmatmul.f32.gmra.mxu0 %v261
        %v284 = vpop.f32.mrf.mxu0
        %v285 = vadd.f32 0.0, %v284
        %286 = vdwg.mxu0
        %v287 = vld [vmem:[%s3] sm:$0xff]
        %v288 = vld [vmem:[%s3 + $0x8] sm:$0xff]
        %v289 = vld [vmem:[%s3 + $0x10] sm:$0xff]
        %v290 = vld [vmem:[%s3 + $0x18] sm:$0xff]
        %vm291 = vcmask 261120
        %v293 = vsel %vm291, %v285, 0
        %295 = vmatpush.msra.mxu0 0.0
        %296 = vmatpush.msra.mxu0 0.0
        %297 = vmatpush.msra.mxu0 0.0
        %298 = vmatpush.msra.mxu0 0.0
        %299 = vmatpush.msra.mxu0 0.0
        %300 = vmatpush.msra.mxu0 0.0
        %301 = vmatpush.msra.mxu0 0.0
        %302 = vmatpush.msra.mxu0 0.0
        %303 = vmatpush.msra.mxu0 0.0
        %304 = vmatpush.msra.mxu0 0.0
        %305 = vmatpush.msra.mxu0 0.0
        %306 = vmatpush.msra.mxu0 0.0
        %307 = vmatpush.msra.mxu0 %v290
        %308 = vmatpush.msra.mxu0 %v289
        %309 = vmatpush.msra.mxu0 %v288
        %310 = vmatpush.msra.mxu0 %v287
        %311 = vmatmul.f32.gmra.mxu0 %v293
        %v312 = vpop.f32.mrf.mxu0
        %v313 = vadd.f32 0.0, %v312
        %314 = vdwg.mxu0
        %v315 = vmul.f32 %v313, %v313
        %vm316 = vcmask 257024
        %v317 = vsel %vm316, %v315, 0.0
        %318 = vadd.xlane.f32.xlu0 %v317
        %v319 = vpop.xlane.xlu0 %318
        %v320 = vmax.f32 %v319, 1e-16
        %v321 = vrsqrt.pop %v320
        %v322 = vmul.f32 %v321, %v320
        %v323 = vmul.f32 %v322, %v321
        %v324 = vmul.f32 0.5, %v323
        %v325 = vsub.f32 1.5, %v324
        %v326 = vmul.f32 %v321, %v325
        %vm327 = vweird.f32 %v320
        %vm328 = vweird.f32 %v321
        %vm329 = vmor %vm327, %vm328
        %v330 = vsel %vm329, %v321, %v326
        %v331 = vmul.f32 %v313, %v330
        %v332 = vld [vmem:[%s251] sm:$0xff]
        %v333 = vmul.f32 %v332, %v332
        %v334 = vsel %vm291, %v333, 0.0
        %335 = vadd.xlane.f32.xlu0 %v334
        %v336 = vpop.xlane.xlu0 %335
        %v337 = vmax.f32 %v336, 1e-16
        %v338 = vrsqrt.pop %v337
        %v339 = vmul.f32 %v338, %v337
        %v340 = vmul.f32 %v339, %v338
        %v341 = vmul.f32 0.5, %v340
        %v342 = vsub.f32 1.5, %v341
        %v343 = vmul.f32 %v338, %v342
        %vm344 = vweird.f32 %v337
        %vm345 = vweird.f32 %v338
        %vm346 = vmor %vm344, %vm345
        %v347 = vsel %vm346, %v338, %v343
        %s348 = sld [smem:[#allocation2]]
        %v349 = vstv %s348
        %v350 = vmul.f32 %v347, %v349
        %v352 = vsel %vm291, %v331, 0
        %v355 = vsel %vm291, %v332, 0
        %357 = vmatpush.xpose.msra.mxu0 0.0
        %358 = vmatpush.xpose.msra.mxu0 0.0
        %359 = vmatpush.xpose.msra.mxu0 0.0
        %360 = vmatpush.xpose.msra.mxu0 0.0
        %361 = vmatpush.xpose.msra.mxu0 0.0
        %362 = vmatpush.xpose.msra.mxu0 0.0
        %363 = vmatpush.xpose.msra.mxu0 0.0
        %364 = vmatpush.xpose.msra.mxu0 0.0
        %365 = vmatpush.xpose.msra.mxu0 0.0
        %366 = vmatpush.xpose.msra.mxu0 0.0
        %367 = vmatpush.xpose.msra.mxu0 0.0
        %368 = vmatpush.xpose.msra.mxu0 0.0
        %369 = vmatpush.xpose.msra.mxu0 0.0
        %370 = vmatpush.xpose.msra.mxu0 0.0
        %371 = vmatpush.xpose.msra.mxu0 0.0
        %372 = vmatpush.xpose.msra.mxu0 %v355
        %373 = vmatmul.f32.gmra.mxu0 %v352
        %v374 = vpop.f32.mrf.mxu0
        %v375 = vadd.f32 0.0, %v374
        %376 = vdwg.mxu0
        %v378 = vlaneseq
        %v379 = vand.u32 %v378, 127
        %v380 = vperm.slane %v350, %v379
        %vm381 = vcmask 1042434
        %v382 = vsel %vm381, %v380, %v380
        %vm383 = vcmask 1043459
        %v384 = vsel %vm383, %v380, %v382
        %v386 = vmul.f32 %v375, %v384
        %vm387 = vcmask 60416
        %388 = vst.msk [vmem:[%s240] sm:$0xf] %vm387, %v386
        %s389 = sand.u32 %s148, 1
        %s390 = scalar_lea.sflag [#allocation4], %s389
        %s391 = sand.u32 %s148, 1
        %s392 = smul.addr %s391, 4
        %s393 = scalar_lea.vmem [#allocation3], %s392
        // Predicated region
        $region41: #{classification_head_forward.1} parent=39 // pred_check
          %p394 = pneg %p158
        $region42: #{classification_head_forward.1} parent=39 // pred_check_branch
          %396 = sbr.rel (%p394) target = $region44
        $region43: #{classification_head_forward.1} parent=39 // pred_region
          %398 = vsyncadd %s390, 0
          %s399 = smul.addr %s20, 4
          %s400 = scalar_lea.hbm %s5, %s399
          %s402 = sshll.u32 %s393, 4
          %s403 = int_to_ptr.vmem [resolvable:$true] %s402
          %s404 = sshll.u32 %s400, 4
          %s405 = int_to_ptr.hbm [resolvable:$true] %s404
          %407 = dma.vmem_to_hbm [thread:$0]  %s403, 64, %s405, %s390
        $region44: #{classification_head_forward.1} parent=39 // pred_fallthru
          _
      $region40: #{classification_head_forward.1} parent=5 // pred_fallthru
        _
      %p408 = scmp.le.s32.totalorder 2, %s15
      // Predicated region
      $region45: #{classification_head_forward.1} parent=5 // pred_check
        %p409 = pneg %p408
      $region46: #{classification_head_forward.1} parent=5 // pred_check_branch
        %411 = sbr.rel (%p409) target = $region48
      $region47: #{classification_head_forward.1} parent=5 // pred_region
        %s412 = ssub.s32 %s15, 2
        // Predicated region
        $region49: #{classification_head_forward.1} parent=47 // pred_check
          %p413 = pneg %p164
        $region50: #{classification_head_forward.1} parent=47 // pred_check_branch
          %415 = sbr.rel (%p413) target = $region52
        $region51: #{classification_head_forward.1} parent=47 // pred_region
          %s416 = sand.u32 %s149, 1
          %s417 = scalar_lea.sflag [#allocation4], %s416
          %s418 = sand.u32 %s149, 1
          %s419 = smul.addr %s418, 4
          %s420 = scalar_lea.vmem [#allocation3], %s419
          %422 = dma.done %s417, 64
        $region52: #{classification_head_forward.1} parent=47 // pred_fallthru
          _
      $region48: #{classification_head_forward.1} parent=5 // pred_fallthru
        _
    $region6: #{classification_head_forward.1} parent=1 // loop_footer
      %s19 = sadd.s32 1, %s15
    $region7: #{classification_head_forward.1} parent=1 // loop_footer_branch
      %14 = sbr.rel target = $region3
    $region8: #{classification_head_forward.1} parent=1 // loop_exit
      _
    %423 = vsyncpa [#allocation4], 1
    %s424 = scalar_lea.sflag [#allocation4], 1
    %425 = vsyncpa %s424, 1

</llo_original>
